<compile_context>
chip_gen: v7x
topology: tpu7x:2x2x1
jax: 0.10.0
libtpu: 0.0.40
codegen_flags: <defaults>
</compile_context>

<pallas_src>
import math

import jax
import jax.numpy as jnp
from jax.experimental import pallas as pl
from jax.experimental.pallas import tpu as pltpu

INPUT_NUM = 2
NEURON0_NUM = 20
NEURON1_NUM = 10
OUTPUT_NUM = 2


def _mlp_kernel(x_ref, w0_ref, b0_ref, w1_ref, b1_ref, w2_ref, b2_ref, o_ref):
    x = x_ref[0]  # (C_in, tile_l): channels on sublanes, positions on lanes

    def fma_mm(w, h):
        # (C_out, C_in) @ (C_in, M) via unrolled VPU broadcast-FMA.
        # K is tiny & static (2 / 20 / 10), so this stays off the MXU and is a
        # handful of lane-dense VALU ops per tile; accumulation stays f32.
        cin = h.shape[0]
        acc = w[:, 0:1] * h[0:1, :]
        for k in range(1, cin):
            acc = acc + w[:, k:k + 1] * h[k:k + 1, :]
        return acc

    w0 = w0_ref[...]
    w1 = w1_ref[...]
    w2 = w2_ref[...]

    # layer0: Conv1d(INPUT_NUM -> NEURON0_NUM, k=1) + relu
    h0 = jnp.maximum(fma_mm(w0, x) + b0_ref[...], 0.0)
    # layer1: Conv1d(NEURON0_NUM -> NEURON1_NUM, k=1) + relu
    h1 = jnp.maximum(fma_mm(w1, h0) + b1_ref[...], 0.0)
    # layer2: Conv1d(NEURON1_NUM -> OUTPUT_NUM, k=1), no activation
    o_ref[0] = (fma_mm(w2, h1) + b2_ref[...]).astype(o_ref.dtype)


def _pick_tile_l(L):
    """Lane-axis tile: prefer a multiple of 128 that divides L (lane-dense,
    many grid steps for DMA/compute overlap, VMEM-safe even on v7x's 64 MiB);
    otherwise fall back to the full extent."""
    for cand in (2048, 1024, 512, 256, 128):
        if L % cand == 0:
            return cand
    return L


def mymodel_forward(x_ncl, params, *, tile_l=None):
    """x_ncl: (N, C_in, L) float32 (PyTorch NCL layout). Returns (N, C_out, L)."""
    (w0, b0), (w1, b1), (w2, b2) = params
    N, C, L = x_ncl.shape
    assert C == INPUT_NUM

    if tile_l is None:
        tile_l = _pick_tile_l(L)
    assert L % tile_l == 0, "tile_l must divide L"
    grid = (N, L // tile_l)

    # Biases as (C_out, 1) columns so they broadcast over the lane (M) axis.
    b0c, b1c, b2c = b0[:, None], b1[:, None], b2[:, None]

    flops = 2 * N * L * (INPUT_NUM * NEURON0_NUM
                         + NEURON0_NUM * NEURON1_NUM
                         + NEURON1_NUM * OUTPUT_NUM)
    bytes_accessed = 4 * N * L * (INPUT_NUM + OUTPUT_NUM)

    return pl.pallas_call(
        _mlp_kernel,
        out_shape=jax.ShapeDtypeStruct((N, OUTPUT_NUM, L), jnp.float32),
        grid_spec=pltpu.PrefetchScalarGridSpec(
            num_scalar_prefetch=0,
            grid=grid,
            in_specs=[
                pl.BlockSpec((1, C, tile_l), lambda n, l: (n, 0, l)),            # x slab
                pl.BlockSpec((NEURON0_NUM, INPUT_NUM), lambda n, l: (0, 0)),     # w0
                pl.BlockSpec((NEURON0_NUM, 1), lambda n, l: (0, 0)),             # b0
                pl.BlockSpec((NEURON1_NUM, NEURON0_NUM), lambda n, l: (0, 0)),   # w1
                pl.BlockSpec((NEURON1_NUM, 1), lambda n, l: (0, 0)),             # b1
                pl.BlockSpec((OUTPUT_NUM, NEURON1_NUM), lambda n, l: (0, 0)),    # w2
                pl.BlockSpec((OUTPUT_NUM, 1), lambda n, l: (0, 0)),              # b2
            ],
            out_specs=pl.BlockSpec((1, OUTPUT_NUM, tile_l), lambda n, l: (n, 0, l)),
        ),
        compiler_params=pltpu.CompilerParams(
            dimension_semantics=("parallel", "parallel"),
            vmem_limit_bytes=32 * 1024 * 1024,  # tiny tiles; safe on v5e/v6e/v7x
        ),
        cost_estimate=pl.CostEstimate(
            flops=flops, transcendentals=0, bytes_accessed=bytes_accessed),
    )(x_ncl, w0, b0c, w1, b1c, w2, b2c)


def init_params(key):
    """Deterministic init mirroring PyTorch Conv1d default (kaiming-uniform-ish bound)."""
    def conv1d_params(k, c_in, c_out):
        kw, kb = jax.random.split(k)
        bound = 1.0 / math.sqrt(c_in * 1)  # kernel_size = 1
        w = jax.random.uniform(kw, (c_out, c_in), jnp.float32, -bound, bound)
        b = jax.random.uniform(kb, (c_out,), jnp.float32, -bound, bound)
        return w, b

    k0, k1, k2 = jax.random.split(key, 3)
    return (
        conv1d_params(k0, INPUT_NUM, NEURON0_NUM),
        conv1d_params(k1, NEURON0_NUM, NEURON1_NUM),
        conv1d_params(k2, NEURON1_NUM, OUTPUT_NUM),
    )


def _reference(x_ncl, params):
    (w0, b0), (w1, b1), (w2, b2) = params
    # conv1d k=1 == einsum over channel dim
    h = jnp.maximum(jnp.einsum("oc,ncl->nol", w0, x_ncl) + b0[None, :, None], 0.0)
    h = jnp.maximum(jnp.einsum("oc,ncl->nol", w1, h) + b1[None, :, None], 0.0)
    return jnp.einsum("oc,ncl->nol", w2, h) + b2[None, :, None]


if __name__ == "__main__":
    key = jax.random.PRNGKey(0)
    kx, kp = jax.random.split(key)

    N, C, L = 2, INPUT_NUM, 16
    x = jax.random.normal(kx, (N, C, L), jnp.float32)
    params = init_params(kp)

    out = mymodel_forward(x, params)
    out = jax.block_until_ready(out)

    ref = _reference(x, params)
    assert out.shape == (N, OUTPUT_NUM, L), out.shape
    assert jnp.allclose(out, ref, atol=1e-5, rtol=1e-5), "mismatch vs reference"

    print("KERNEL_OK")
</pallas_src>

<mosaic_0001>
module attributes {stable_mosaic.version = 11 : i64} {
  func.func @_mlp_kernel(%arg0: i32, %arg1: i32, %arg2: memref<1x2x16xf32, #tpu.memory_space<vmem>>, %arg3: memref<20x2xf32, #tpu.memory_space<vmem>>, %arg4: memref<20x1xf32, #tpu.memory_space<vmem>>, %arg5: memref<10x20xf32, #tpu.memory_space<vmem>>, %arg6: memref<10x1xf32, #tpu.memory_space<vmem>>, %arg7: memref<2x10xf32, #tpu.memory_space<vmem>>, %arg8: memref<2x1xf32, #tpu.memory_space<vmem>>, %arg9: memref<1x2x16xf32, #tpu.memory_space<vmem>>) attributes {dimension_semantics = [#tpu.dimension_semantics<parallel>, #tpu.dimension_semantics<parallel>], iteration_bounds = array<i64: 2, 1>, scalar_prefetch = 0 : i64, scratch_operands = 0 : i64, tpu.core_type = #tpu.core_type<tc>, window_params = [{transform_indices = @transform_0, window_bounds = array<i64: 1, 2, 16>}, {pipeline_mode = #tpu.pipeline_mode<synchronous>, transform_indices = @transform_1, window_bounds = array<i64: 20, 2>}, {pipeline_mode = #tpu.pipeline_mode<synchronous>, transform_indices = @transform_2, window_bounds = array<i64: 20, 1>}, {pipeline_mode = #tpu.pipeline_mode<synchronous>, transform_indices = @transform_3, window_bounds = array<i64: 10, 20>}, {pipeline_mode = #tpu.pipeline_mode<synchronous>, transform_indices = @transform_4, window_bounds = array<i64: 10, 1>}, {pipeline_mode = #tpu.pipeline_mode<synchronous>, transform_indices = @transform_5, window_bounds = array<i64: 2, 10>}, {pipeline_mode = #tpu.pipeline_mode<synchronous>, transform_indices = @transform_6, window_bounds = array<i64: 2, 1>}, {transform_indices = @transform_7, window_bounds = array<i64: 1, 2, 16>}]} {
    %c0 = arith.constant 0 : index
    %c0_0 = arith.constant 0 : index
    %c0_1 = arith.constant 0 : index
    %0 = vector.load %arg2[%c0, %c0_0, %c0_1] : memref<1x2x16xf32, #tpu.memory_space<vmem>>, vector<1x2x16xf32>
    %1 = vector.shape_cast %0 : vector<1x2x16xf32> to vector<2x16xf32>
    %c0_2 = arith.constant 0 : index
    %c0_3 = arith.constant 0 : index
    %2 = vector.load %arg3[%c0_2, %c0_3] : memref<20x2xf32, #tpu.memory_space<vmem>>, vector<20x2xf32>
    %c0_4 = arith.constant 0 : index
    %c0_5 = arith.constant 0 : index
    %3 = vector.load %arg5[%c0_4, %c0_5] : memref<10x20xf32, #tpu.memory_space<vmem>>, vector<10x20xf32>
    %c0_6 = arith.constant 0 : index
    %c0_7 = arith.constant 0 : index
    %4 = vector.load %arg7[%c0_6, %c0_7] : memref<2x10xf32, #tpu.memory_space<vmem>>, vector<2x10xf32>
    %5 = vector.extract_strided_slice %2 {offsets = [0, 0], sizes = [20, 1], strides = [1, 1]} : vector<20x2xf32> to vector<20x1xf32>
    %6 = vector.extract_strided_slice %1 {offsets = [0, 0], sizes = [1, 16], strides = [1, 1]} : vector<2x16xf32> to vector<1x16xf32>
    %7 = vector.broadcast %5 : vector<20x1xf32> to vector<20x16xf32>
    %8 = vector.broadcast %6 : vector<1x16xf32> to vector<20x16xf32>
    %9 = arith.mulf %7, %8 : vector<20x16xf32>
    %10 = vector.extract_strided_slice %2 {offsets = [0, 1], sizes = [20, 1], strides = [1, 1]} : vector<20x2xf32> to vector<20x1xf32>
    %11 = vector.extract_strided_slice %1 {offsets = [1, 0], sizes = [1, 16], strides = [1, 1]} : vector<2x16xf32> to vector<1x16xf32>
    %12 = vector.broadcast %10 : vector<20x1xf32> to vector<20x16xf32>
    %13 = vector.broadcast %11 : vector<1x16xf32> to vector<20x16xf32>
    %14 = arith.mulf %12, %13 : vector<20x16xf32>
    %15 = arith.addf %9, %14 : vector<20x16xf32>
    %c0_8 = arith.constant 0 : index
    %c0_9 = arith.constant 0 : index
    %16 = vector.load %arg4[%c0_8, %c0_9] : memref<20x1xf32, #tpu.memory_space<vmem>>, vector<20x1xf32>
    %17 = vector.broadcast %16 : vector<20x1xf32> to vector<20x16xf32>
    %18 = arith.addf %15, %17 : vector<20x16xf32>
    %cst = arith.constant 0.000000e+00 : f32
    %19 = vector.broadcast %cst : f32 to vector<20x16xf32>
    %20 = arith.maximumf %18, %19 : vector<20x16xf32>
    %21 = vector.extract_strided_slice %3 {offsets = [0, 0], sizes = [10, 1], strides = [1, 1]} : vector<10x20xf32> to vector<10x1xf32>
    %22 = vector.extract_strided_slice %20 {offsets = [0, 0], sizes = [1, 16], strides = [1, 1]} : vector<20x16xf32> to vector<1x16xf32>
    %23 = vector.broadcast %21 : vector<10x1xf32> to vector<10x16xf32>
    %24 = vector.broadcast %22 : vector<1x16xf32> to vector<10x16xf32>
    %25 = arith.mulf %23, %24 : vector<10x16xf32>
    %26 = vector.extract_strided_slice %3 {offsets = [0, 1], sizes = [10, 1], strides = [1, 1]} : vector<10x20xf32> to vector<10x1xf32>
    %27 = vector.extract_strided_slice %20 {offsets = [1, 0], sizes = [1, 16], strides = [1, 1]} : vector<20x16xf32> to vector<1x16xf32>
    %28 = vector.broadcast %26 : vector<10x1xf32> to vector<10x16xf32>
    %29 = vector.broadcast %27 : vector<1x16xf32> to vector<10x16xf32>
    %30 = arith.mulf %28, %29 : vector<10x16xf32>
    %31 = arith.addf %25, %30 : vector<10x16xf32>
    %32 = vector.extract_strided_slice %3 {offsets = [0, 2], sizes = [10, 1], strides = [1, 1]} : vector<10x20xf32> to vector<10x1xf32>
    %33 = vector.extract_strided_slice %20 {offsets = [2, 0], sizes = [1, 16], strides = [1, 1]} : vector<20x16xf32> to vector<1x16xf32>
    %34 = vector.broadcast %32 : vector<10x1xf32> to vector<10x16xf32>
    %35 = vector.broadcast %33 : vector<1x16xf32> to vector<10x16xf32>
    %36 = arith.mulf %34, %35 : vector<10x16xf32>
    %37 = arith.addf %31, %36 : vector<10x16xf32>
    %38 = vector.extract_strided_slice %3 {offsets = [0, 3], sizes = [10, 1], strides = [1, 1]} : vector<10x20xf32> to vector<10x1xf32>
    %39 = vector.extract_strided_slice %20 {offsets = [3, 0], sizes = [1, 16], strides = [1, 1]} : vector<20x16xf32> to vector<1x16xf32>
    %40 = vector.broadcast %38 : vector<10x1xf32> to vector<10x16xf32>
    %41 = vector.broadcast %39 : vector<1x16xf32> to vector<10x16xf32>
    %42 = arith.mulf %40, %41 : vector<10x16xf32>
    %43 = arith.addf %37, %42 : vector<10x16xf32>
    %44 = vector.extract_strided_slice %3 {offsets = [0, 4], sizes = [10, 1], strides = [1, 1]} : vector<10x20xf32> to vector<10x1xf32>
    %45 = vector.extract_strided_slice %20 {offsets = [4, 0], sizes = [1, 16], strides = [1, 1]} : vector<20x16xf32> to vector<1x16xf32>
    %46 = vector.broadcast %44 : vector<10x1xf32> to vector<10x16xf32>
    %47 = vector.broadcast %45 : vector<1x16xf32> to vector<10x16xf32>
    %48 = arith.mulf %46, %47 : vector<10x16xf32>
    %49 = arith.addf %43, %48 : vector<10x16xf32>
    %50 = vector.extract_strided_slice %3 {offsets = [0, 5], sizes = [10, 1], strides = [1, 1]} : vector<10x20xf32> to vector<10x1xf32>
    %51 = vector.extract_strided_slice %20 {offsets = [5, 0], sizes = [1, 16], strides = [1, 1]} : vector<20x16xf32> to vector<1x16xf32>
    %52 = vector.broadcast %50 : vector<10x1xf32> to vector<10x16xf32>
    %53 = vector.broadcast %51 : vector<1x16xf32> to vector<10x16xf32>
    %54 = arith.mulf %52, %53 : vector<10x16xf32>
    %55 = arith.addf %49, %54 : vector<10x16xf32>
    %56 = vector.extract_strided_slice %3 {offsets = [0, 6], sizes = [10, 1], strides = [1, 1]} : vector<10x20xf32> to vector<10x1xf32>
    %57 = vector.extract_strided_slice %20 {offsets = [6, 0], sizes = [1, 16], strides = [1, 1]} : vector<20x16xf32> to vector<1x16xf32>
    %58 = vector.broadcast %56 : vector<10x1xf32> to vector<10x16xf32>
    %59 = vector.broadcast %57 : vector<1x16xf32> to vector<10x16xf32>
    %60 = arith.mulf %58, %59 : vector<10x16xf32>
    %61 = arith.addf %55, %60 : vector<10x16xf32>
    %62 = vector.extract_strided_slice %3 {offsets = [0, 7], sizes = [10, 1], strides = [1, 1]} : vector<10x20xf32> to vector<10x1xf32>
    %63 = vector.extract_strided_slice %20 {offsets = [7, 0], sizes = [1, 16], strides = [1, 1]} : vector<20x16xf32> to vector<1x16xf32>
    %64 = vector.broadcast %62 : vector<10x1xf32> to vector<10x16xf32>
    %65 = vector.broadcast %63 : vector<1x16xf32> to vector<10x16xf32>
    %66 = arith.mulf %64, %65 : vector<10x16xf32>
    %67 = arith.addf %61, %66 : vector<10x16xf32>
    %68 = vector.extract_strided_slice %3 {offsets = [0, 8], sizes = [10, 1], strides = [1, 1]} : vector<10x20xf32> to vector<10x1xf32>
    %69 = vector.extract_strided_slice %20 {offsets = [8, 0], sizes = [1, 16], strides = [1, 1]} : vector<20x16xf32> to vector<1x16xf32>
    %70 = vector.broadcast %68 : vector<10x1xf32> to vector<10x16xf32>
    %71 = vector.broadcast %69 : vector<1x16xf32> to vector<10x16xf32>
    %72 = arith.mulf %70, %71 : vector<10x16xf32>
    %73 = arith.addf %67, %72 : vector<10x16xf32>
    %74 = vector.extract_strided_slice %3 {offsets = [0, 9], sizes = [10, 1], strides = [1, 1]} : vector<10x20xf32> to vector<10x1xf32>
    %75 = vector.extract_strided_slice %20 {offsets = [9, 0], sizes = [1, 16], strides = [1, 1]} : vector<20x16xf32> to vector<1x16xf32>
    %76 = vector.broadcast %74 : vector<10x1xf32> to vector<10x16xf32>
    %77 = vector.broadcast %75 : vector<1x16xf32> to vector<10x16xf32>
    %78 = arith.mulf %76, %77 : vector<10x16xf32>
    %79 = arith.addf %73, %78 : vector<10x16xf32>
    %80 = vector.extract_strided_slice %3 {offsets = [0, 10], sizes = [10, 1], strides = [1, 1]} : vector<10x20xf32> to vector<10x1xf32>
    %81 = vector.extract_strided_slice %20 {offsets = [10, 0], sizes = [1, 16], strides = [1, 1]} : vector<20x16xf32> to vector<1x16xf32>
    %82 = vector.broadcast %80 : vector<10x1xf32> to vector<10x16xf32>
    %83 = vector.broadcast %81 : vector<1x16xf32> to vector<10x16xf32>
    %84 = arith.mulf %82, %83 : vector<10x16xf32>
    %85 = arith.addf %79, %84 : vector<10x16xf32>
    %86 = vector.extract_strided_slice %3 {offsets = [0, 11], sizes = [10, 1], strides = [1, 1]} : vector<10x20xf32> to vector<10x1xf32>
    %87 = vector.extract_strided_slice %20 {offsets = [11, 0], sizes = [1, 16], strides = [1, 1]} : vector<20x16xf32> to vector<1x16xf32>
    %88 = vector.broadcast %86 : vector<10x1xf32> to vector<10x16xf32>
    %89 = vector.broadcast %87 : vector<1x16xf32> to vector<10x16xf32>
    %90 = arith.mulf %88, %89 : vector<10x16xf32>
    %91 = arith.addf %85, %90 : vector<10x16xf32>
    %92 = vector.extract_strided_slice %3 {offsets = [0, 12], sizes = [10, 1], strides = [1, 1]} : vector<10x20xf32> to vector<10x1xf32>
    %93 = vector.extract_strided_slice %20 {offsets = [12, 0], sizes = [1, 16], strides = [1, 1]} : vector<20x16xf32> to vector<1x16xf32>
    %94 = vector.broadcast %92 : vector<10x1xf32> to vector<10x16xf32>
    %95 = vector.broadcast %93 : vector<1x16xf32> to vector<10x16xf32>
    %96 = arith.mulf %94, %95 : vector<10x16xf32>
    %97 = arith.addf %91, %96 : vector<10x16xf32>
    %98 = vector.extract_strided_slice %3 {offsets = [0, 13], sizes = [10, 1], strides = [1, 1]} : vector<10x20xf32> to vector<10x1xf32>
    %99 = vector.extract_strided_slice %20 {offsets = [13, 0], sizes = [1, 16], strides = [1, 1]} : vector<20x16xf32> to vector<1x16xf32>
    %100 = vector.broadcast %98 : vector<10x1xf32> to vector<10x16xf32>
    %101 = vector.broadcast %99 : vector<1x16xf32> to vector<10x16xf32>
    %102 = arith.mulf %100, %101 : vector<10x16xf32>
    %103 = arith.addf %97, %102 : vector<10x16xf32>
    %104 = vector.extract_strided_slice %3 {offsets = [0, 14], sizes = [10, 1], strides = [1, 1]} : vector<10x20xf32> to vector<10x1xf32>
    %105 = vector.extract_strided_slice %20 {offsets = [14, 0], sizes = [1, 16], strides = [1, 1]} : vector<20x16xf32> to vector<1x16xf32>
    %106 = vector.broadcast %104 : vector<10x1xf32> to vector<10x16xf32>
    %107 = vector.broadcast %105 : vector<1x16xf32> to vector<10x16xf32>
    %108 = arith.mulf %106, %107 : vector<10x16xf32>
    %109 = arith.addf %103, %108 : vector<10x16xf32>
    %110 = vector.extract_strided_slice %3 {offsets = [0, 15], sizes = [10, 1], strides = [1, 1]} : vector<10x20xf32> to vector<10x1xf32>
    %111 = vector.extract_strided_slice %20 {offsets = [15, 0], sizes = [1, 16], strides = [1, 1]} : vector<20x16xf32> to vector<1x16xf32>
    %112 = vector.broadcast %110 : vector<10x1xf32> to vector<10x16xf32>
    %113 = vector.broadcast %111 : vector<1x16xf32> to vector<10x16xf32>
    %114 = arith.mulf %112, %113 : vector<10x16xf32>
    %115 = arith.addf %109, %114 : vector<10x16xf32>
    %116 = vector.extract_strided_slice %3 {offsets = [0, 16], sizes = [10, 1], strides = [1, 1]} : vector<10x20xf32> to vector<10x1xf32>
    %117 = vector.extract_strided_slice %20 {offsets = [16, 0], sizes = [1, 16], strides = [1, 1]} : vector<20x16xf32> to vector<1x16xf32>
    %118 = vector.broadcast %116 : vector<10x1xf32> to vector<10x16xf32>
    %119 = vector.broadcast %117 : vector<1x16xf32> to vector<10x16xf32>
    %120 = arith.mulf %118, %119 : vector<10x16xf32>
    %121 = arith.addf %115, %120 : vector<10x16xf32>
    %122 = vector.extract_strided_slice %3 {offsets = [0, 17], sizes = [10, 1], strides = [1, 1]} : vector<10x20xf32> to vector<10x1xf32>
    %123 = vector.extract_strided_slice %20 {offsets = [17, 0], sizes = [1, 16], strides = [1, 1]} : vector<20x16xf32> to vector<1x16xf32>
    %124 = vector.broadcast %122 : vector<10x1xf32> to vector<10x16xf32>
    %125 = vector.broadcast %123 : vector<1x16xf32> to vector<10x16xf32>
    %126 = arith.mulf %124, %125 : vector<10x16xf32>
    %127 = arith.addf %121, %126 : vector<10x16xf32>
    %128 = vector.extract_strided_slice %3 {offsets = [0, 18], sizes = [10, 1], strides = [1, 1]} : vector<10x20xf32> to vector<10x1xf32>
    %129 = vector.extract_strided_slice %20 {offsets = [18, 0], sizes = [1, 16], strides = [1, 1]} : vector<20x16xf32> to vector<1x16xf32>
    %130 = vector.broadcast %128 : vector<10x1xf32> to vector<10x16xf32>
    %131 = vector.broadcast %129 : vector<1x16xf32> to vector<10x16xf32>
    %132 = arith.mulf %130, %131 : vector<10x16xf32>
    %133 = arith.addf %127, %132 : vector<10x16xf32>
    %134 = vector.extract_strided_slice %3 {offsets = [0, 19], sizes = [10, 1], strides = [1, 1]} : vector<10x20xf32> to vector<10x1xf32>
    %135 = vector.extract_strided_slice %20 {offsets = [19, 0], sizes = [1, 16], strides = [1, 1]} : vector<20x16xf32> to vector<1x16xf32>
    %136 = vector.broadcast %134 : vector<10x1xf32> to vector<10x16xf32>
    %137 = vector.broadcast %135 : vector<1x16xf32> to vector<10x16xf32>
    %138 = arith.mulf %136, %137 : vector<10x16xf32>
    %139 = arith.addf %133, %138 : vector<10x16xf32>
    %c0_10 = arith.constant 0 : index
    %c0_11 = arith.constant 0 : index
    %140 = vector.load %arg6[%c0_10, %c0_11] : memref<10x1xf32, #tpu.memory_space<vmem>>, vector<10x1xf32>
    %141 = vector.broadcast %140 : vector<10x1xf32> to vector<10x16xf32>
    %142 = arith.addf %139, %141 : vector<10x16xf32>
    %cst_12 = arith.constant 0.000000e+00 : f32
    %143 = vector.broadcast %cst_12 : f32 to vector<10x16xf32>
    %144 = arith.maximumf %142, %143 : vector<10x16xf32>
    %145 = vector.extract_strided_slice %4 {offsets = [0, 0], sizes = [2, 1], strides = [1, 1]} : vector<2x10xf32> to vector<2x1xf32>
    %146 = vector.extract_strided_slice %144 {offsets = [0, 0], sizes = [1, 16], strides = [1, 1]} : vector<10x16xf32> to vector<1x16xf32>
    %147 = vector.broadcast %145 : vector<2x1xf32> to vector<2x16xf32>
    %148 = vector.broadcast %146 : vector<1x16xf32> to vector<2x16xf32>
    %149 = arith.mulf %147, %148 : vector<2x16xf32>
    %150 = vector.extract_strided_slice %4 {offsets = [0, 1], sizes = [2, 1], strides = [1, 1]} : vector<2x10xf32> to vector<2x1xf32>
    %151 = vector.extract_strided_slice %144 {offsets = [1, 0], sizes = [1, 16], strides = [1, 1]} : vector<10x16xf32> to vector<1x16xf32>
    %152 = vector.broadcast %150 : vector<2x1xf32> to vector<2x16xf32>
    %153 = vector.broadcast %151 : vector<1x16xf32> to vector<2x16xf32>
    %154 = arith.mulf %152, %153 : vector<2x16xf32>
    %155 = arith.addf %149, %154 : vector<2x16xf32>
    %156 = vector.extract_strided_slice %4 {offsets = [0, 2], sizes = [2, 1], strides = [1, 1]} : vector<2x10xf32> to vector<2x1xf32>
    %157 = vector.extract_strided_slice %144 {offsets = [2, 0], sizes = [1, 16], strides = [1, 1]} : vector<10x16xf32> to vector<1x16xf32>
    %158 = vector.broadcast %156 : vector<2x1xf32> to vector<2x16xf32>
    %159 = vector.broadcast %157 : vector<1x16xf32> to vector<2x16xf32>
    %160 = arith.mulf %158, %159 : vector<2x16xf32>
    %161 = arith.addf %155, %160 : vector<2x16xf32>
    %162 = vector.extract_strided_slice %4 {offsets = [0, 3], sizes = [2, 1], strides = [1, 1]} : vector<2x10xf32> to vector<2x1xf32>
    %163 = vector.extract_strided_slice %144 {offsets = [3, 0], sizes = [1, 16], strides = [1, 1]} : vector<10x16xf32> to vector<1x16xf32>
    %164 = vector.broadcast %162 : vector<2x1xf32> to vector<2x16xf32>
    %165 = vector.broadcast %163 : vector<1x16xf32> to vector<2x16xf32>
    %166 = arith.mulf %164, %165 : vector<2x16xf32>
    %167 = arith.addf %161, %166 : vector<2x16xf32>
    %168 = vector.extract_strided_slice %4 {offsets = [0, 4], sizes = [2, 1], strides = [1, 1]} : vector<2x10xf32> to vector<2x1xf32>
    %169 = vector.extract_strided_slice %144 {offsets = [4, 0], sizes = [1, 16], strides = [1, 1]} : vector<10x16xf32> to vector<1x16xf32>
    %170 = vector.broadcast %168 : vector<2x1xf32> to vector<2x16xf32>
    %171 = vector.broadcast %169 : vector<1x16xf32> to vector<2x16xf32>
    %172 = arith.mulf %170, %171 : vector<2x16xf32>
    %173 = arith.addf %167, %172 : vector<2x16xf32>
    %174 = vector.extract_strided_slice %4 {offsets = [0, 5], sizes = [2, 1], strides = [1, 1]} : vector<2x10xf32> to vector<2x1xf32>
    %175 = vector.extract_strided_slice %144 {offsets = [5, 0], sizes = [1, 16], strides = [1, 1]} : vector<10x16xf32> to vector<1x16xf32>
    %176 = vector.broadcast %174 : vector<2x1xf32> to vector<2x16xf32>
    %177 = vector.broadcast %175 : vector<1x16xf32> to vector<2x16xf32>
    %178 = arith.mulf %176, %177 : vector<2x16xf32>
    %179 = arith.addf %173, %178 : vector<2x16xf32>
    %180 = vector.extract_strided_slice %4 {offsets = [0, 6], sizes = [2, 1], strides = [1, 1]} : vector<2x10xf32> to vector<2x1xf32>
    %181 = vector.extract_strided_slice %144 {offsets = [6, 0], sizes = [1, 16], strides = [1, 1]} : vector<10x16xf32> to vector<1x16xf32>
    %182 = vector.broadcast %180 : vector<2x1xf32> to vector<2x16xf32>
    %183 = vector.broadcast %181 : vector<1x16xf32> to vector<2x16xf32>
    %184 = arith.mulf %182, %183 : vector<2x16xf32>
    %185 = arith.addf %179, %184 : vector<2x16xf32>
    %186 = vector.extract_strided_slice %4 {offsets = [0, 7], sizes = [2, 1], strides = [1, 1]} : vector<2x10xf32> to vector<2x1xf32>
    %187 = vector.extract_strided_slice %144 {offsets = [7, 0], sizes = [1, 16], strides = [1, 1]} : vector<10x16xf32> to vector<1x16xf32>
    %188 = vector.broadcast %186 : vector<2x1xf32> to vector<2x16xf32>
    %189 = vector.broadcast %187 : vector<1x16xf32> to vector<2x16xf32>
    %190 = arith.mulf %188, %189 : vector<2x16xf32>
    %191 = arith.addf %185, %190 : vector<2x16xf32>
    %192 = vector.extract_strided_slice %4 {offsets = [0, 8], sizes = [2, 1], strides = [1, 1]} : vector<2x10xf32> to vector<2x1xf32>
    %193 = vector.extract_strided_slice %144 {offsets = [8, 0], sizes = [1, 16], strides = [1, 1]} : vector<10x16xf32> to vector<1x16xf32>
    %194 = vector.broadcast %192 : vector<2x1xf32> to vector<2x16xf32>
    %195 = vector.broadcast %193 : vector<1x16xf32> to vector<2x16xf32>
    %196 = arith.mulf %194, %195 : vector<2x16xf32>
    %197 = arith.addf %191, %196 : vector<2x16xf32>
    %198 = vector.extract_strided_slice %4 {offsets = [0, 9], sizes = [2, 1], strides = [1, 1]} : vector<2x10xf32> to vector<2x1xf32>
    %199 = vector.extract_strided_slice %144 {offsets = [9, 0], sizes = [1, 16], strides = [1, 1]} : vector<10x16xf32> to vector<1x16xf32>
    %200 = vector.broadcast %198 : vector<2x1xf32> to vector<2x16xf32>
    %201 = vector.broadcast %199 : vector<1x16xf32> to vector<2x16xf32>
    %202 = arith.mulf %200, %201 : vector<2x16xf32>
    %203 = arith.addf %197, %202 : vector<2x16xf32>
    %c0_13 = arith.constant 0 : index
    %c0_14 = arith.constant 0 : index
    %204 = vector.load %arg8[%c0_13, %c0_14] : memref<2x1xf32, #tpu.memory_space<vmem>>, vector<2x1xf32>
    %205 = vector.broadcast %204 : vector<2x1xf32> to vector<2x16xf32>
    %206 = arith.addf %203, %205 : vector<2x16xf32>
    %c0_15 = arith.constant 0 : index
    %c0_16 = arith.constant 0 : index
    %c0_17 = arith.constant 0 : index
    %207 = vector.load %arg9[%c0_15, %c0_16, %c0_17] : memref<1x2x16xf32, #tpu.memory_space<vmem>>, vector<1x2x16xf32>
    %208 = vector.shape_cast %207 : vector<1x2x16xf32> to vector<2x16xf32>
    %209 = vector.shape_cast %206 : vector<2x16xf32> to vector<1x2x16xf32>
    tpu.vector_store %arg9[%c0_15, %c0_16, %c0_17], %209 {strides = array<i32>} : memref<1x2x16xf32, #tpu.memory_space<vmem>>, vector<1x2x16xf32>,
    return
  }
  func.func @transform_0(%arg0: i32, %arg1: i32) -> (i32, i32, i32) {
    %c0_i32 = arith.constant 0 : i32
    %c0_i32_0 = arith.constant 0 : i32
    return %arg0, %c0_i32, %arg1 : i32, i32, i32
  }
  func.func @transform_1(%arg0: i32, %arg1: i32) -> (i32, i32) {
    %c0_i32 = arith.constant 0 : i32
    %c0_i32_0 = arith.constant 0 : i32
    %c0_i32_1 = arith.constant 0 : i32
    return %c0_i32, %c0_i32_0 : i32, i32
  }
  func.func @transform_2(%arg0: i32, %arg1: i32) -> (i32, i32) {
    %c0_i32 = arith.constant 0 : i32
    %c0_i32_0 = arith.constant 0 : i32
    %c0_i32_1 = arith.constant 0 : i32
    return %c0_i32, %c0_i32_0 : i32, i32
  }
  func.func @transform_3(%arg0: i32, %arg1: i32) -> (i32, i32) {
    %c0_i32 = arith.constant 0 : i32
    %c0_i32_0 = arith.constant 0 : i32
    %c0_i32_1 = arith.constant 0 : i32
    return %c0_i32, %c0_i32_0 : i32, i32
  }
  func.func @transform_4(%arg0: i32, %arg1: i32) -> (i32, i32) {
    %c0_i32 = arith.constant 0 : i32
    %c0_i32_0 = arith.constant 0 : i32
    %c0_i32_1 = arith.constant 0 : i32
    return %c0_i32, %c0_i32_0 : i32, i32
  }
  func.func @transform_5(%arg0: i32, %arg1: i32) -> (i32, i32) {
    %c0_i32 = arith.constant 0 : i32
    %c0_i32_0 = arith.constant 0 : i32
    %c0_i32_1 = arith.constant 0 : i32
    return %c0_i32, %c0_i32_0 : i32, i32
  }
  func.func @transform_6(%arg0: i32, %arg1: i32) -> (i32, i32) {
    %c0_i32 = arith.constant 0 : i32
    %c0_i32_0 = arith.constant 0 : i32
    %c0_i32_1 = arith.constant 0 : i32
    return %c0_i32, %c0_i32_0 : i32, i32
  }
  func.func @transform_7(%arg0: i32, %arg1: i32) -> (i32, i32, i32) {
    %c0_i32 = arith.constant 0 : i32
    %c0_i32_0 = arith.constant 0 : i32
    return %arg0, %c0_i32, %arg1 : i32, i32, i32
  }
}

</mosaic_0001>

<llo_original>
// kernel: tpu_custom_call.1
$region0: #{tpu_custom_call.1}
  #allocation0 [shape = 'u32[]', space=smem, size = 0x4, offset = 0x4, fixed_abs, tag = 'smem constant byte address 0x4 - core index']
  #allocation1 [shape = 'u32[144,128]{1,0:T(1,128)}', space=vmem, size = 0x12000, scoped, tag = 'internal scratch']
  %s0 = inlined_call_operand.vmem [shape: f32[2,2,16], index: 0, kind: input, shape index: {}]
  %s1 = inlined_call_operand.vmem [shape: f32[20,2], index: 1, kind: input, shape index: {}]
  %s2 = inlined_call_operand.vmem [shape: f32[20,1], index: 2, kind: input, shape index: {}]
  %s3 = inlined_call_operand.vmem [shape: f32[10,20], index: 3, kind: input, shape index: {}]
  %s4 = inlined_call_operand.vmem [shape: f32[10,1], index: 4, kind: input, shape index: {}]
  %s5 = inlined_call_operand.vmem [shape: f32[2,10], index: 5, kind: input, shape index: {}]
  %s6 = inlined_call_operand.vmem [shape: f32[2,1], index: 6, kind: input, shape index: {}]
  %s7 = inlined_call_operand.hbm [shape: f32[2,2,16], index: 7, kind: output, shape index: {}]
  %s8 = sld [smem:[#allocation0]]
  $region61: #{tpu_custom_call.1} parent=0
    _
  %s10 = ssub.s32 1, %s8
  %s11 = scalar_select 0, %s10, %s8
  $region1: #{tpu_custom_call.1} parent=0
    #allocation2 [shape = 'u8[2048]{0}', space=vmem, size = 0x800, scoped, tag = 'output window, operand 0']
    #allocation3 [shape = 's32[2]{0}', space=sflag, size = 0x8, scoped, tag = 'scoped memory for tpu_custom_call.1']
    %12 = vsyncpa [#allocation3], 0
    %s13 = scalar_lea.sflag [#allocation3], 1
    %14 = vsyncpa %s13, 0
    loop: start=0, step=1, limit=4
    $region2: #{tpu_custom_call.1} parent=1 // loop_pre_header
      _
    $region3: #{tpu_custom_call.1} parent=1 // loop_header
      %s16 = sphi 0, %s20
      %p17 = scmp.ge.s32.totalorder %s16, 4
      %s23 = sphi 0, %s35
      %s24 = sphi 0, %s31
      %s25 = sphi 0, %s23
      %s26 = sphi 0, %s24
      %s27 = sphi 0, %s25
      %s28 = sphi 0, %s26
      %s40 = sphi 0, %s42
      %s43 = sphi 0, %s40
      %s44 = sphi 0, %s43
      %s60 = sphi 0, %s44
      %s64 = sphi 0, %s64
      %s66 = sphi 0, %s64
      %s67 = sphi 0, %s66
      %s81 = sphi 0, %s67
      %s85 = sphi 0, %s85
      %s87 = sphi 0, %s85
      %s88 = sphi 0, %s87
      %s102 = sphi 0, %s88
      %s106 = sphi 0, %s106
      %s108 = sphi 0, %s106
      %s109 = sphi 0, %s108
      %s123 = sphi 0, %s109
      %s127 = sphi 0, %s127
      %s129 = sphi 0, %s127
      %s130 = sphi 0, %s129
      %s144 = sphi 0, %s130
      %s148 = sphi 0, %s148
      %s150 = sphi 0, %s148
      %s151 = sphi 0, %s150
      %s165 = sphi 0, %s151
      %s169 = sphi 0, %s169
      %s171 = sphi 0, %s169
      %s172 = sphi 0, %s171
      %s186 = sphi 0, %s172
      %s194 = sphi 0, %s196
      %s197 = sphi 0, %s194
      %s198 = sphi 0, %s197
      %s214 = sphi 0, %s198
    $region4: #{tpu_custom_call.1} parent=1 // loop_header_branch
      %19 = sbr.rel (%p17) target = $region8
    $region5: #{tpu_custom_call.1} parent=1 // loop_body
      %s21 = ssub.s32 %s16, 1
      %s22 = ssub.s32 %s16, 2
      %s29 = sadd.s32 1, %s24
      %p30 = scmp.ge.s32.totalorder %s29, 1
      %s31 = scalar_select %p30, 0, %s29
      %s32 = sadd.s32 1, %s23
      %s33 = scalar_select %p30, %s32, %s23
      %p34 = scmp.ge.s32.totalorder %s33, 2
      %s35 = scalar_select %p34, 0, %s33
      %s36 = ssub.s32 %s23, %s35
      %s37 = ssub.s32 %s24, %s31
      %s38 = sor.u32 %s36, %s37
      %p39 = scmp.eq.s32.totalorder %s38, 0
      %s41 = sadd.s32 %s40, 1
      %s42 = scalar_select %p39, %s40, %s41
      %p45 = pneg %p39
      %p46 = scmp.eq.s32.totalorder %s16, 1
      %p47 = por %p45, %p46
      %p48 = scmp.ne.s32.totalorder %s40, %s43
      %p49 = scmp.eq.s32.totalorder %s16, 0
      %p50 = por %p48, %p49
      %p51 = scmp.ne.s32.totalorder %s40, %s43
      %p52 = scmp.eq.s32.totalorder %s21, 1
      %p53 = por %p51, %p52
      %p54 = scmp.ne.s32.totalorder %s43, %s44
      %p55 = scmp.eq.s32.totalorder %s21, 0
      %p56 = por %p54, %p55
      %p57 = scmp.ne.s32.totalorder %s43, %s44
      %p58 = scmp.eq.s32.totalorder %s22, 1
      %p59 = por %p57, %p58
      %p61 = scmp.ne.s32.totalorder %s44, %s60
      %p62 = scmp.eq.s32.totalorder %s22, 0
      %p63 = por %p61, %p62
      %s65 = sadd.s32 %s64, 1
      %p68 = scmp.eq.s32.totalorder %s16, 1
      %p69 = scmp.ne.s32.totalorder %s64, %s66
      %p70 = scmp.eq.s32.totalorder %s16, 0
      %p71 = por %p69, %p70
      %p72 = scmp.ne.s32.totalorder %s64, %s66
      %p73 = scmp.eq.s32.totalorder %s21, 1
      %p74 = por %p72, %p73
      %p75 = scmp.ne.s32.totalorder %s66, %s67
      %p76 = scmp.eq.s32.totalorder %s21, 0
      %p77 = por %p75, %p76
      %p78 = scmp.ne.s32.totalorder %s66, %s67
      %p79 = scmp.eq.s32.totalorder %s22, 1
      %p80 = por %p78, %p79
      %p82 = scmp.ne.s32.totalorder %s67, %s81
      %p83 = scmp.eq.s32.totalorder %s22, 0
      %p84 = por %p82, %p83
      %s86 = sadd.s32 %s85, 1
      %p89 = scmp.eq.s32.totalorder %s16, 1
      %p90 = scmp.ne.s32.totalorder %s85, %s87
      %p91 = scmp.eq.s32.totalorder %s16, 0
      %p92 = por %p90, %p91
      %p93 = scmp.ne.s32.totalorder %s85, %s87
      %p94 = scmp.eq.s32.totalorder %s21, 1
      %p95 = por %p93, %p94
      %p96 = scmp.ne.s32.totalorder %s87, %s88
      %p97 = scmp.eq.s32.totalorder %s21, 0
      %p98 = por %p96, %p97
      %p99 = scmp.ne.s32.totalorder %s87, %s88
      %p100 = scmp.eq.s32.totalorder %s22, 1
      %p101 = por %p99, %p100
      %p103 = scmp.ne.s32.totalorder %s88, %s102
      %p104 = scmp.eq.s32.totalorder %s22, 0
      %p105 = por %p103, %p104
      %s107 = sadd.s32 %s106, 1
      %p110 = scmp.eq.s32.totalorder %s16, 1
      %p111 = scmp.ne.s32.totalorder %s106, %s108
      %p112 = scmp.eq.s32.totalorder %s16, 0
      %p113 = por %p111, %p112
      %p114 = scmp.ne.s32.totalorder %s106, %s108
      %p115 = scmp.eq.s32.totalorder %s21, 1
      %p116 = por %p114, %p115
      %p117 = scmp.ne.s32.totalorder %s108, %s109
      %p118 = scmp.eq.s32.totalorder %s21, 0
      %p119 = por %p117, %p118
      %p120 = scmp.ne.s32.totalorder %s108, %s109
      %p121 = scmp.eq.s32.totalorder %s22, 1
      %p122 = por %p120, %p121
      %p124 = scmp.ne.s32.totalorder %s109, %s123
      %p125 = scmp.eq.s32.totalorder %s22, 0
      %p126 = por %p124, %p125
      %s128 = sadd.s32 %s127, 1
      %p131 = scmp.eq.s32.totalorder %s16, 1
      %p132 = scmp.ne.s32.totalorder %s127, %s129
      %p133 = scmp.eq.s32.totalorder %s16, 0
      %p134 = por %p132, %p133
      %p135 = scmp.ne.s32.totalorder %s127, %s129
      %p136 = scmp.eq.s32.totalorder %s21, 1
      %p137 = por %p135, %p136
      %p138 = scmp.ne.s32.totalorder %s129, %s130
      %p139 = scmp.eq.s32.totalorder %s21, 0
      %p140 = por %p138, %p139
      %p141 = scmp.ne.s32.totalorder %s129, %s130
      %p142 = scmp.eq.s32.totalorder %s22, 1
      %p143 = por %p141, %p142
      %p145 = scmp.ne.s32.totalorder %s130, %s144
      %p146 = scmp.eq.s32.totalorder %s22, 0
      %p147 = por %p145, %p146
      %s149 = sadd.s32 %s148, 1
      %p152 = scmp.eq.s32.totalorder %s16, 1
      %p153 = scmp.ne.s32.totalorder %s148, %s150
      %p154 = scmp.eq.s32.totalorder %s16, 0
      %p155 = por %p153, %p154
      %p156 = scmp.ne.s32.totalorder %s148, %s150
      %p157 = scmp.eq.s32.totalorder %s21, 1
      %p158 = por %p156, %p157
      %p159 = scmp.ne.s32.totalorder %s150, %s151
      %p160 = scmp.eq.s32.totalorder %s21, 0
      %p161 = por %p159, %p160
      %p162 = scmp.ne.s32.totalorder %s150, %s151
      %p163 = scmp.eq.s32.totalorder %s22, 1
      %p164 = por %p162, %p163
      %p166 = scmp.ne.s32.totalorder %s151, %s165
      %p167 = scmp.eq.s32.totalorder %s22, 0
      %p168 = por %p166, %p167
      %s170 = sadd.s32 %s169, 1
      %p173 = scmp.eq.s32.totalorder %s16, 1
      %p174 = scmp.ne.s32.totalorder %s169, %s171
      %p175 = scmp.eq.s32.totalorder %s16, 0
      %p176 = por %p174, %p175
      %p177 = scmp.ne.s32.totalorder %s169, %s171
      %p178 = scmp.eq.s32.totalorder %s21, 1
      %p179 = por %p177, %p178
      %p180 = scmp.ne.s32.totalorder %s171, %s172
      %p181 = scmp.eq.s32.totalorder %s21, 0
      %p182 = por %p180, %p181
      %p183 = scmp.ne.s32.totalorder %s171, %s172
      %p184 = scmp.eq.s32.totalorder %s22, 1
      %p185 = por %p183, %p184
      %p187 = scmp.ne.s32.totalorder %s172, %s186
      %p188 = scmp.eq.s32.totalorder %s22, 0
      %p189 = por %p187, %p188
      %s190 = ssub.s32 %s23, %s35
      %s191 = ssub.s32 %s24, %s31
      %s192 = sor.u32 %s190, %s191
      %p193 = scmp.eq.s32.totalorder %s192, 0
      %s195 = sadd.s32 %s194, 1
      %s196 = scalar_select %p193, %s194, %s195
      %p199 = pneg %p193
      %p200 = scmp.eq.s32.totalorder %s16, 1
      %p201 = por %p199, %p200
      %p202 = scmp.ne.s32.totalorder %s194, %s197
      %p203 = scmp.eq.s32.totalorder %s16, 0
      %p204 = por %p202, %p203
      %p205 = scmp.ne.s32.totalorder %s194, %s197
      %p206 = scmp.eq.s32.totalorder %s21, 1
      %p207 = por %p205, %p206
      %p208 = scmp.ne.s32.totalorder %s197, %s198
      %p209 = scmp.eq.s32.totalorder %s21, 0
      %p210 = por %p208, %p209
      %p211 = scmp.ne.s32.totalorder %s197, %s198
      %p212 = scmp.eq.s32.totalorder %s22, 1
      %p213 = por %p211, %p212
      %p215 = scmp.ne.s32.totalorder %s198, %s214
      %p216 = scmp.eq.s32.totalorder %s22, 0
      %p217 = por %p215, %p216
      %p218 = scmp.le.s32.totalorder 1, %s16
      %p219 = scmp.lt.s32.totalorder %s16, 3
      %p220 = pnand %p218, %p219
      %p221 = pneg %p220
      // Predicated region
      $region9: #{tpu_custom_call.1} parent=5 // pred_check
        _
      $region10: #{tpu_custom_call.1} parent=5 // pred_check_branch
        %223 = sbr.rel (%p220) target = $region12
      $region11: #{tpu_custom_call.1} parent=5 // pred_region
        %s224 = ssub.s32 %s16, 1
        // Predicated region
        $region13: #{tpu_custom_call.1} parent=11 // pred_check
          %p225 = pneg %p77
        $region14: #{tpu_custom_call.1} parent=11 // pred_check_branch
          %227 = sbr.rel (%p225) target = $region16
        $region15: #{tpu_custom_call.1} parent=11 // pred_region
          _
        $region16: #{tpu_custom_call.1} parent=11 // pred_fallthru
          _
        // Predicated region
        $region17: #{tpu_custom_call.1} parent=11 // pred_check
          %p228 = pneg %p98
        $region18: #{tpu_custom_call.1} parent=11 // pred_check_branch
          %230 = sbr.rel (%p228) target = $region20
        $region19: #{tpu_custom_call.1} parent=11 // pred_region
          _
        $region20: #{tpu_custom_call.1} parent=11 // pred_fallthru
          _
        // Predicated region
        $region21: #{tpu_custom_call.1} parent=11 // pred_check
          %p231 = pneg %p119
        $region22: #{tpu_custom_call.1} parent=11 // pred_check_branch
          %233 = sbr.rel (%p231) target = $region24
        $region23: #{tpu_custom_call.1} parent=11 // pred_region
          _
        $region24: #{tpu_custom_call.1} parent=11 // pred_fallthru
          _
        // Predicated region
        $region25: #{tpu_custom_call.1} parent=11 // pred_check
          %p234 = pneg %p140
        $region26: #{tpu_custom_call.1} parent=11 // pred_check_branch
          %236 = sbr.rel (%p234) target = $region28
        $region27: #{tpu_custom_call.1} parent=11 // pred_region
          _
        $region28: #{tpu_custom_call.1} parent=11 // pred_fallthru
          _
        // Predicated region
        $region29: #{tpu_custom_call.1} parent=11 // pred_check
          %p237 = pneg %p161
        $region30: #{tpu_custom_call.1} parent=11 // pred_check_branch
          %239 = sbr.rel (%p237) target = $region32
        $region31: #{tpu_custom_call.1} parent=11 // pred_region
          _
        $region32: #{tpu_custom_call.1} parent=11 // pred_fallthru
          _
        // Predicated region
        $region33: #{tpu_custom_call.1} parent=11 // pred_check
          %p240 = pneg %p182
        $region34: #{tpu_custom_call.1} parent=11 // pred_check_branch
          %242 = sbr.rel (%p240) target = $region36
        $region35: #{tpu_custom_call.1} parent=11 // pred_region
          _
        $region36: #{tpu_custom_call.1} parent=11 // pred_fallthru
          _
      $region12: #{tpu_custom_call.1} parent=5 // pred_fallthru
        _
      %p243 = scmp.lt.s32.totalorder %s16, 2
      // Predicated region
      $region37: #{tpu_custom_call.1} parent=5 // pred_check
        %p244 = pneg %p243
      $region38: #{tpu_custom_call.1} parent=5 // pred_check_branch
        %246 = sbr.rel (%p244) target = $region40
      $region39: #{tpu_custom_call.1} parent=5 // pred_region
        // Predicated region
        $region41: #{tpu_custom_call.1} parent=39 // pred_check
          %p247 = pneg %p50
        $region42: #{tpu_custom_call.1} parent=39 // pred_check_branch
          %249 = sbr.rel (%p247) target = $region44
        $region43: #{tpu_custom_call.1} parent=39 // pred_region
          %p250 = scmp.lt.s32.totalorder %s23, 1
          %s251 = scalar_select %p250, %s23, 1
          %p252 = scmp.lt.s32.totalorder %s24, 0
          %s253 = scalar_select %p252, %s24, 0
          %s254 = sadd.s32 %s253, %s251
          %s255 = smul.addr %s254, 2
          %s256 = scalar_lea.vmem %s0, %s255
        $region44: #{tpu_custom_call.1} parent=39 // pred_fallthru
          _
      $region40: #{tpu_custom_call.1} parent=5 // pred_fallthru
        _
      %p257 = scmp.le.s32.totalorder 1, %s16
      %p258 = scmp.lt.s32.totalorder %s16, 3
      %p259 = pnand %p257, %p258
      %p260 = pneg %p259
      // Predicated region
      $region45: #{tpu_custom_call.1} parent=5 // pred_check
        _
      $region46: #{tpu_custom_call.1} parent=5 // pred_check_branch
        %262 = sbr.rel (%p259) target = $region48
      $region47: #{tpu_custom_call.1} parent=5 // pred_region
        %s263 = ssub.s32 %s16, 1
        %p264 = scmp.lt.s32.totalorder %s25, 1
        %s265 = scalar_select %p264, %s25, 1
        %p266 = scmp.lt.s32.totalorder %s26, 0
        %s267 = scalar_select %p266, %s26, 0
        %s268 = sadd.s32 %s267, %s265
        %s269 = smul.addr %s268, 2
        %s270 = scalar_lea.vmem %s0, %s269
        %p271 = pneg %p56
        %p272 = pneg %p53
        %p273 = pneg %p77
        %p274 = pneg %p74
        %p275 = pneg %p98
        %p276 = pneg %p95
        %p277 = pneg %p119
        %p278 = pneg %p116
        %p279 = pneg %p140
        %p280 = pneg %p137
        %p281 = pneg %p161
        %p282 = pneg %p158
        %p283 = pneg %p182
        %p284 = pneg %p179
        %p285 = pneg %p210
        %p286 = pneg %p207
        %s287 = sand.u32 %s197, 1
        %s288 = scalar_lea.sflag [#allocation3], %s287
        %s289 = sand.u32 %s197, 1
        %s290 = smul.addr %s289, 2
        %s291 = scalar_lea.vmem [#allocation2], %s290
        %p292 = scmp.lt.s32.totalorder %s25, 1
        %s293 = scalar_select %p292, %s25, 1
        %p294 = scmp.lt.s32.totalorder %s26, 0
        %s295 = scalar_select %p294, %s26, 0
        %s296 = sadd.s32 %s295, %s293
        %s297 = smul.addr %s296, 2
        %s298 = scalar_lea.vmem %s0, %s297
        %v299 = vld [vmem:[%s298] sm:$0x3]
        %v300 = vld [vmem:[%s1] sm:$0xff]
        %v301 = vld [vmem:[%s1 + $0x8] sm:$0xff]
        %v302 = vld [vmem:[%s1 + $0x10] sm:$0xf]
        %v303 = vld [vmem:[%s3] sm:$0xff]
        %v304 = vld [vmem:[%s3 + $0x8] sm:$0x3]
        %v305 = vld [vmem:[%s5] sm:$0x3]
        %307 = vset.pattern.permute.xlu0 0
        %308 = vperm.xlu0 %307, %v300
        %v309 = vpop.permute.xlu0 %308
        %312 = vset.pattern.permute.xlu0 0
        %313 = vperm.xlu0 %312, %v301
        %v314 = vpop.permute.xlu0 %313
        %317 = vset.pattern.permute.xlu0 0
        %318 = vperm.xlu0 %317, %v302
        %v319 = vpop.permute.xlu0 %318
        %v321 = vlaneseq
        %v322 = vshrl.u32 %v321, 7
        %v323 = vsub.s32 0, %v322
        %v324 = vrot.slane %v299, %v323
        %v325 = vmul.f32 %v309, %v324
        %v326 = vmul.f32 %v314, %v324
        %v327 = vmul.f32 %v319, %v324
        %328 = vset.pattern.permute.xlu0 1
        %329 = vperm.xlu0 %328, %v300
        %v330 = vpop.permute.xlu0 %329
        %332 = vset.pattern.permute.xlu0 1
        %333 = vperm.xlu0 %332, %v301
        %v334 = vpop.permute.xlu0 %333
        %336 = vset.pattern.permute.xlu0 1
        %337 = vperm.xlu0 %336, %v302
        %v338 = vpop.permute.xlu0 %337
        %v340 = vlaneseq
        %v341 = vshrl.u32 %v340, 7
        %v342 = vsub.s32 1, %v341
        %v343 = vrot.slane %v299, %v342
        %v344 = vmul.f32 %v330, %v343
        %v345 = vmul.f32 %v334, %v343
        %v346 = vmul.f32 %v338, %v343
        %v347 = vadd.f32 %v325, %v344
        %v348 = vadd.f32 %v326, %v345
        %v349 = vadd.f32 %v327, %v346
        %v350 = vld [vmem:[%s2] sm:$0xff]
        %v351 = vld [vmem:[%s2 + $0x8] sm:$0xff]
        %v352 = vld [vmem:[%s2 + $0x10] sm:$0xf]
        %354 = vset.pattern.permute.xlu0 0
        %355 = vperm.xlu0 %354, %v350
        %v356 = vpop.permute.xlu0 %355
        %359 = vset.pattern.permute.xlu0 0
        %360 = vperm.xlu0 %359, %v351
        %v361 = vpop.permute.xlu0 %360
        %364 = vset.pattern.permute.xlu0 0
        %365 = vperm.xlu0 %364, %v352
        %v366 = vpop.permute.xlu0 %365
        %v368 = vadd.f32 %v347, %v356
        %v369 = vadd.f32 %v348, %v361
        %v370 = vadd.f32 %v349, %v366
        %v371 = vmax.f32 %v368, 0.0
        %v372 = vmax.f32 %v369, 0.0
        %v373 = vmax.f32 %v370, 0.0
        %375 = vset.pattern.permute.xlu0 0
        %376 = vperm.xlu0 %375, %v303
        %v377 = vpop.permute.xlu0 %376
        %380 = vset.pattern.permute.xlu0 0
        %381 = vperm.xlu0 %380, %v304
        %v382 = vpop.permute.xlu0 %381
        %v384 = vlaneseq
        %v385 = vshrl.u32 %v384, 7
        %v386 = vsub.s32 0, %v385
        %v387 = vrot.slane %v371, %v386
        %v388 = vmul.f32 %v377, %v387
        %v389 = vmul.f32 %v382, %v387
        %390 = vset.pattern.permute.xlu0 1
        %391 = vperm.xlu0 %390, %v303
        %v392 = vpop.permute.xlu0 %391
        %394 = vset.pattern.permute.xlu0 1
        %395 = vperm.xlu0 %394, %v304
        %v396 = vpop.permute.xlu0 %395
        %v398 = vlaneseq
        %v399 = vshrl.u32 %v398, 7
        %v400 = vsub.s32 1, %v399
        %v401 = vrot.slane %v371, %v400
        %v402 = vmul.f32 %v392, %v401
        %v403 = vmul.f32 %v396, %v401
        %v404 = vadd.f32 %v388, %v402
        %v405 = vadd.f32 %v389, %v403
        %406 = vset.pattern.permute.xlu0 2
        %407 = vperm.xlu0 %406, %v303
        %v408 = vpop.permute.xlu0 %407
        %410 = vset.pattern.permute.xlu0 2
        %411 = vperm.xlu0 %410, %v304
        %v412 = vpop.permute.xlu0 %411
        %v414 = vlaneseq
        %v415 = vshrl.u32 %v414, 7
        %v416 = vsub.s32 2, %v415
        %v417 = vrot.slane %v371, %v416
        %v418 = vmul.f32 %v408, %v417
        %v419 = vmul.f32 %v412, %v417
        %v420 = vadd.f32 %v404, %v418
        %v421 = vadd.f32 %v405, %v419
        %422 = vset.pattern.permute.xlu0 3
        %423 = vperm.xlu0 %422, %v303
        %v424 = vpop.permute.xlu0 %423
        %426 = vset.pattern.permute.xlu0 3
        %427 = vperm.xlu0 %426, %v304
        %v428 = vpop.permute.xlu0 %427
        %v430 = vlaneseq
        %v431 = vshrl.u32 %v430, 7
        %v432 = vsub.s32 3, %v431
        %v433 = vrot.slane %v371, %v432
        %v434 = vmul.f32 %v424, %v433
        %v435 = vmul.f32 %v428, %v433
        %v436 = vadd.f32 %v420, %v434
        %v437 = vadd.f32 %v421, %v435
        %438 = vset.pattern.permute.xlu0 4
        %439 = vperm.xlu0 %438, %v303
        %v440 = vpop.permute.xlu0 %439
        %442 = vset.pattern.permute.xlu0 4
        %443 = vperm.xlu0 %442, %v304
        %v444 = vpop.permute.xlu0 %443
        %v446 = vlaneseq
        %v447 = vshrl.u32 %v446, 7
        %v448 = vsub.s32 4, %v447
        %v449 = vrot.slane %v371, %v448
        %v450 = vmul.f32 %v440, %v449
        %v451 = vmul.f32 %v444, %v449
        %v452 = vadd.f32 %v436, %v450
        %v453 = vadd.f32 %v437, %v451
        %454 = vset.pattern.permute.xlu0 5
        %455 = vperm.xlu0 %454, %v303
        %v456 = vpop.permute.xlu0 %455
        %458 = vset.pattern.permute.xlu0 5
        %459 = vperm.xlu0 %458, %v304
        %v460 = vpop.permute.xlu0 %459
        %v462 = vlaneseq
        %v463 = vshrl.u32 %v462, 7
        %v464 = vsub.s32 5, %v463
        %v465 = vrot.slane %v371, %v464
        %v466 = vmul.f32 %v456, %v465
        %v467 = vmul.f32 %v460, %v465
        %v468 = vadd.f32 %v452, %v466
        %v469 = vadd.f32 %v453, %v467
        %470 = vset.pattern.permute.xlu0 6
        %471 = vperm.xlu0 %470, %v303
        %v472 = vpop.permute.xlu0 %471
        %474 = vset.pattern.permute.xlu0 6
        %475 = vperm.xlu0 %474, %v304
        %v476 = vpop.permute.xlu0 %475
        %v478 = vlaneseq
        %v479 = vshrl.u32 %v478, 7
        %v480 = vsub.s32 6, %v479
        %v481 = vrot.slane %v371, %v480
        %v482 = vmul.f32 %v472, %v481
        %v483 = vmul.f32 %v476, %v481
        %v484 = vadd.f32 %v468, %v482
        %v485 = vadd.f32 %v469, %v483
        %486 = vset.pattern.permute.xlu0 7
        %487 = vperm.xlu0 %486, %v303
        %v488 = vpop.permute.xlu0 %487
        %490 = vset.pattern.permute.xlu0 7
        %491 = vperm.xlu0 %490, %v304
        %v492 = vpop.permute.xlu0 %491
        %v494 = vlaneseq
        %v495 = vshrl.u32 %v494, 7
        %v496 = vsub.s32 7, %v495
        %v497 = vrot.slane %v371, %v496
        %v498 = vmul.f32 %v488, %v497
        %v499 = vmul.f32 %v492, %v497
        %v500 = vadd.f32 %v484, %v498
        %v501 = vadd.f32 %v485, %v499
        %502 = vset.pattern.permute.xlu0 8
        %503 = vperm.xlu0 %502, %v303
        %v504 = vpop.permute.xlu0 %503
        %506 = vset.pattern.permute.xlu0 8
        %507 = vperm.xlu0 %506, %v304
        %v508 = vpop.permute.xlu0 %507
        %v510 = vlaneseq
        %v511 = vshrl.u32 %v510, 7
        %v512 = vsub.s32 0, %v511
        %v513 = vrot.slane %v372, %v512
        %v514 = vmul.f32 %v504, %v513
        %v515 = vmul.f32 %v508, %v513
        %v516 = vadd.f32 %v500, %v514
        %v517 = vadd.f32 %v501, %v515
        %518 = vset.pattern.permute.xlu0 9
        %519 = vperm.xlu0 %518, %v303
        %v520 = vpop.permute.xlu0 %519
        %522 = vset.pattern.permute.xlu0 9
        %523 = vperm.xlu0 %522, %v304
        %v524 = vpop.permute.xlu0 %523
        %v526 = vlaneseq
        %v527 = vshrl.u32 %v526, 7
        %v528 = vsub.s32 1, %v527
        %v529 = vrot.slane %v372, %v528
        %v530 = vmul.f32 %v520, %v529
        %v531 = vmul.f32 %v524, %v529
        %v532 = vadd.f32 %v516, %v530
        %v533 = vadd.f32 %v517, %v531
        %534 = vset.pattern.permute.xlu0 10
        %535 = vperm.xlu0 %534, %v303
        %v536 = vpop.permute.xlu0 %535
        %538 = vset.pattern.permute.xlu0 10
        %539 = vperm.xlu0 %538, %v304
        %v540 = vpop.permute.xlu0 %539
        %v542 = vlaneseq
        %v543 = vshrl.u32 %v542, 7
        %v544 = vsub.s32 2, %v543
        %v545 = vrot.slane %v372, %v544
        %v546 = vmul.f32 %v536, %v545
        %v547 = vmul.f32 %v540, %v545
        %v548 = vadd.f32 %v532, %v546
        %v549 = vadd.f32 %v533, %v547
        %550 = vset.pattern.permute.xlu0 11
        %551 = vperm.xlu0 %550, %v303
        %v552 = vpop.permute.xlu0 %551
        %554 = vset.pattern.permute.xlu0 11
        %555 = vperm.xlu0 %554, %v304
        %v556 = vpop.permute.xlu0 %555
        %v558 = vlaneseq
        %v559 = vshrl.u32 %v558, 7
        %v560 = vsub.s32 3, %v559
        %v561 = vrot.slane %v372, %v560
        %v562 = vmul.f32 %v552, %v561
        %v563 = vmul.f32 %v556, %v561
        %v564 = vadd.f32 %v548, %v562
        %v565 = vadd.f32 %v549, %v563
        %566 = vset.pattern.permute.xlu0 12
        %567 = vperm.xlu0 %566, %v303
        %v568 = vpop.permute.xlu0 %567
        %570 = vset.pattern.permute.xlu0 12
        %571 = vperm.xlu0 %570, %v304
        %v572 = vpop.permute.xlu0 %571
        %v574 = vlaneseq
        %v575 = vshrl.u32 %v574, 7
        %v576 = vsub.s32 4, %v575
        %v577 = vrot.slane %v372, %v576
        %v578 = vmul.f32 %v568, %v577
        %v579 = vmul.f32 %v572, %v577
        %v580 = vadd.f32 %v564, %v578
        %v581 = vadd.f32 %v565, %v579
        %582 = vset.pattern.permute.xlu0 13
        %583 = vperm.xlu0 %582, %v303
        %v584 = vpop.permute.xlu0 %583
        %586 = vset.pattern.permute.xlu0 13
        %587 = vperm.xlu0 %586, %v304
        %v588 = vpop.permute.xlu0 %587
        %v590 = vlaneseq
        %v591 = vshrl.u32 %v590, 7
        %v592 = vsub.s32 5, %v591
        %v593 = vrot.slane %v372, %v592
        %v594 = vmul.f32 %v584, %v593
        %v595 = vmul.f32 %v588, %v593
        %v596 = vadd.f32 %v580, %v594
        %v597 = vadd.f32 %v581, %v595
        %598 = vset.pattern.permute.xlu0 14
        %599 = vperm.xlu0 %598, %v303
        %v600 = vpop.permute.xlu0 %599
        %602 = vset.pattern.permute.xlu0 14
        %603 = vperm.xlu0 %602, %v304
        %v604 = vpop.permute.xlu0 %603
        %v606 = vlaneseq
        %v607 = vshrl.u32 %v606, 7
        %v608 = vsub.s32 6, %v607
        %v609 = vrot.slane %v372, %v608
        %v610 = vmul.f32 %v600, %v609
        %v611 = vmul.f32 %v604, %v609
        %v612 = vadd.f32 %v596, %v610
        %v613 = vadd.f32 %v597, %v611
        %614 = vset.pattern.permute.xlu0 15
        %615 = vperm.xlu0 %614, %v303
        %v616 = vpop.permute.xlu0 %615
        %618 = vset.pattern.permute.xlu0 15
        %619 = vperm.xlu0 %618, %v304
        %v620 = vpop.permute.xlu0 %619
        %v622 = vlaneseq
        %v623 = vshrl.u32 %v622, 7
        %v624 = vsub.s32 7, %v623
        %v625 = vrot.slane %v372, %v624
        %v626 = vmul.f32 %v616, %v625
        %v627 = vmul.f32 %v620, %v625
        %v628 = vadd.f32 %v612, %v626
        %v629 = vadd.f32 %v613, %v627
        %630 = vset.pattern.permute.xlu0 16
        %631 = vperm.xlu0 %630, %v303
        %v632 = vpop.permute.xlu0 %631
        %634 = vset.pattern.permute.xlu0 16
        %635 = vperm.xlu0 %634, %v304
        %v636 = vpop.permute.xlu0 %635
        %v638 = vlaneseq
        %v639 = vshrl.u32 %v638, 7
        %v640 = vsub.s32 0, %v639
        %v641 = vrot.slane %v373, %v640
        %v642 = vmul.f32 %v632, %v641
        %v643 = vmul.f32 %v636, %v641
        %v644 = vadd.f32 %v628, %v642
        %v645 = vadd.f32 %v629, %v643
        %646 = vset.pattern.permute.xlu0 17
        %647 = vperm.xlu0 %646, %v303
        %v648 = vpop.permute.xlu0 %647
        %650 = vset.pattern.permute.xlu0 17
        %651 = vperm.xlu0 %650, %v304
        %v652 = vpop.permute.xlu0 %651
        %v654 = vlaneseq
        %v655 = vshrl.u32 %v654, 7
        %v656 = vsub.s32 1, %v655
        %v657 = vrot.slane %v373, %v656
        %v658 = vmul.f32 %v648, %v657
        %v659 = vmul.f32 %v652, %v657
        %v660 = vadd.f32 %v644, %v658
        %v661 = vadd.f32 %v645, %v659
        %662 = vset.pattern.permute.xlu0 18
        %663 = vperm.xlu0 %662, %v303
        %v664 = vpop.permute.xlu0 %663
        %666 = vset.pattern.permute.xlu0 18
        %667 = vperm.xlu0 %666, %v304
        %v668 = vpop.permute.xlu0 %667
        %v670 = vlaneseq
        %v671 = vshrl.u32 %v670, 7
        %v672 = vsub.s32 2, %v671
        %v673 = vrot.slane %v373, %v672
        %v674 = vmul.f32 %v664, %v673
        %v675 = vmul.f32 %v668, %v673
        %v676 = vadd.f32 %v660, %v674
        %v677 = vadd.f32 %v661, %v675
        %678 = vset.pattern.permute.xlu0 19
        %679 = vperm.xlu0 %678, %v303
        %v680 = vpop.permute.xlu0 %679
        %682 = vset.pattern.permute.xlu0 19
        %683 = vperm.xlu0 %682, %v304
        %v684 = vpop.permute.xlu0 %683
        %v686 = vlaneseq
        %v687 = vshrl.u32 %v686, 7
        %v688 = vsub.s32 3, %v687
        %v689 = vrot.slane %v373, %v688
        %v690 = vmul.f32 %v680, %v689
        %v691 = vmul.f32 %v684, %v689
        %v692 = vadd.f32 %v676, %v690
        %v693 = vadd.f32 %v677, %v691
        %v694 = vld [vmem:[%s4] sm:$0xff]
        %v695 = vld [vmem:[%s4 + $0x8] sm:$0x3]
        %697 = vset.pattern.permute.xlu0 0
        %698 = vperm.xlu0 %697, %v694
        %v699 = vpop.permute.xlu0 %698
        %702 = vset.pattern.permute.xlu0 0
        %703 = vperm.xlu0 %702, %v695
        %v704 = vpop.permute.xlu0 %703
        %v706 = vadd.f32 %v692, %v699
        %v707 = vadd.f32 %v693, %v704
        %v708 = vmax.f32 %v706, 0.0
        %v709 = vmax.f32 %v707, 0.0
        %711 = vset.pattern.permute.xlu0 0
        %712 = vperm.xlu0 %711, %v305
        %v713 = vpop.permute.xlu0 %712
        %v715 = vlaneseq
        %v716 = vshrl.u32 %v715, 7
        %v717 = vsub.s32 0, %v716
        %v718 = vrot.slane %v708, %v717
        %v719 = vmul.f32 %v713, %v718
        %720 = vset.pattern.permute.xlu0 1
        %721 = vperm.xlu0 %720, %v305
        %v722 = vpop.permute.xlu0 %721
        %v724 = vlaneseq
        %v725 = vshrl.u32 %v724, 7
        %v726 = vsub.s32 1, %v725
        %v727 = vrot.slane %v708, %v726
        %v728 = vmul.f32 %v722, %v727
        %v729 = vadd.f32 %v719, %v728
        %730 = vset.pattern.permute.xlu0 2
        %731 = vperm.xlu0 %730, %v305
        %v732 = vpop.permute.xlu0 %731
        %v734 = vlaneseq
        %v735 = vshrl.u32 %v734, 7
        %v736 = vsub.s32 2, %v735
        %v737 = vrot.slane %v708, %v736
        %v738 = vmul.f32 %v732, %v737
        %v739 = vadd.f32 %v729, %v738
        %740 = vset.pattern.permute.xlu0 3
        %741 = vperm.xlu0 %740, %v305
        %v742 = vpop.permute.xlu0 %741
        %v744 = vlaneseq
        %v745 = vshrl.u32 %v744, 7
        %v746 = vsub.s32 3, %v745
        %v747 = vrot.slane %v708, %v746
        %v748 = vmul.f32 %v742, %v747
        %v749 = vadd.f32 %v739, %v748
        %750 = vset.pattern.permute.xlu0 4
        %751 = vperm.xlu0 %750, %v305
        %v752 = vpop.permute.xlu0 %751
        %v754 = vlaneseq
        %v755 = vshrl.u32 %v754, 7
        %v756 = vsub.s32 4, %v755
        %v757 = vrot.slane %v708, %v756
        %v758 = vmul.f32 %v752, %v757
        %v759 = vadd.f32 %v749, %v758
        %760 = vset.pattern.permute.xlu0 5
        %761 = vperm.xlu0 %760, %v305
        %v762 = vpop.permute.xlu0 %761
        %v764 = vlaneseq
        %v765 = vshrl.u32 %v764, 7
        %v766 = vsub.s32 5, %v765
        %v767 = vrot.slane %v708, %v766
        %v768 = vmul.f32 %v762, %v767
        %v769 = vadd.f32 %v759, %v768
        %770 = vset.pattern.permute.xlu0 6
        %771 = vperm.xlu0 %770, %v305
        %v772 = vpop.permute.xlu0 %771
        %v774 = vlaneseq
        %v775 = vshrl.u32 %v774, 7
        %v776 = vsub.s32 6, %v775
        %v777 = vrot.slane %v708, %v776
        %v778 = vmul.f32 %v772, %v777
        %v779 = vadd.f32 %v769, %v778
        %780 = vset.pattern.permute.xlu0 7
        %781 = vperm.xlu0 %780, %v305
        %v782 = vpop.permute.xlu0 %781
        %v784 = vlaneseq
        %v785 = vshrl.u32 %v784, 7
        %v786 = vsub.s32 7, %v785
        %v787 = vrot.slane %v708, %v786
        %v788 = vmul.f32 %v782, %v787
        %v789 = vadd.f32 %v779, %v788
        %790 = vset.pattern.permute.xlu0 8
        %791 = vperm.xlu0 %790, %v305
        %v792 = vpop.permute.xlu0 %791
        %v794 = vlaneseq
        %v795 = vshrl.u32 %v794, 7
        %v796 = vsub.s32 0, %v795
        %v797 = vrot.slane %v709, %v796
        %v798 = vmul.f32 %v792, %v797
        %v799 = vadd.f32 %v789, %v798
        %800 = vset.pattern.permute.xlu0 9
        %801 = vperm.xlu0 %800, %v305
        %v802 = vpop.permute.xlu0 %801
        %v804 = vlaneseq
        %v805 = vshrl.u32 %v804, 7
        %v806 = vsub.s32 1, %v805
        %v807 = vrot.slane %v709, %v806
        %v808 = vmul.f32 %v802, %v807
        %v809 = vadd.f32 %v799, %v808
        %v810 = vld [vmem:[%s6] sm:$0x3]
        %812 = vset.pattern.permute.xlu0 0
        %813 = vperm.xlu0 %812, %v810
        %v814 = vpop.permute.xlu0 %813
        %v816 = vadd.f32 %v809, %v814
        %vm817 = vcmask 123904
        %818 = vst.msk [vmem:[%s291] sm:$0x3] %vm817, %v816
        %s819 = sand.u32 %s197, 1
        %s820 = scalar_lea.sflag [#allocation3], %s819
        %s821 = sand.u32 %s197, 1
        %s822 = smul.addr %s821, 2
        %s823 = scalar_lea.vmem [#allocation2], %s822
        // Predicated region
        $region49: #{tpu_custom_call.1} parent=47 // pred_check
          %p824 = pneg %p207
        $region50: #{tpu_custom_call.1} parent=47 // pred_check_branch
          %826 = sbr.rel (%p824) target = $region52
        $region51: #{tpu_custom_call.1} parent=47 // pred_region
          %s828 = ssub.s32 32, 32
          %829 = vsyncadd %s820, %s828
          %s830 = sadd.s32 %s26, %s25
          %s831 = smul.addr %s830, 32
          %s832 = scalar_lea.hbm %s7, %s831
          %s834 = sshll.u32 %s823, 4
          %s835 = int_to_ptr.vmem [resolvable:$true] %s834
          %837 = dma.vmem_to_hbm [thread:$0]  %s835, 32, %s832, %s820
        $region52: #{tpu_custom_call.1} parent=47 // pred_fallthru
          _
      $region48: #{tpu_custom_call.1} parent=5 // pred_fallthru
        _
      %p838 = scmp.le.s32.totalorder 2, %s16
      // Predicated region
      $region53: #{tpu_custom_call.1} parent=5 // pred_check
        %p839 = pneg %p838
      $region54: #{tpu_custom_call.1} parent=5 // pred_check_branch
        %841 = sbr.rel (%p839) target = $region56
      $region55: #{tpu_custom_call.1} parent=5 // pred_region
        %s842 = ssub.s32 %s16, 2
        // Predicated region
        $region57: #{tpu_custom_call.1} parent=55 // pred_check
          %p843 = pneg %p213
        $region58: #{tpu_custom_call.1} parent=55 // pred_check_branch
          %845 = sbr.rel (%p843) target = $region60
        $region59: #{tpu_custom_call.1} parent=55 // pred_region
          %s846 = sand.u32 %s198, 1
          %s847 = scalar_lea.sflag [#allocation3], %s846
          %s848 = sand.u32 %s198, 1
          %s849 = smul.addr %s848, 2
          %s850 = scalar_lea.vmem [#allocation2], %s849
          %851 = dma.done %s847, 32
        $region60: #{tpu_custom_call.1} parent=55 // pred_fallthru
          _
      $region56: #{tpu_custom_call.1} parent=5 // pred_fallthru
        _
    $region6: #{tpu_custom_call.1} parent=1 // loop_footer
      %s20 = sadd.s32 1, %s16
    $region7: #{tpu_custom_call.1} parent=1 // loop_footer_branch
      %15 = sbr.rel target = $region3
    $region8: #{tpu_custom_call.1} parent=1 // loop_exit
      _
    %852 = vsyncpa [#allocation3], 1
    %s853 = scalar_lea.sflag [#allocation3], 1
    %854 = vsyncpa %s853, 1

</llo_original>
